<compile_context>
chip_gen: v6e
topology: v6e:2x2x1
jax: 0.10.0
libtpu: 0.0.40
codegen_flags: <defaults>
</compile_context>

<pallas_src>
import jax
import jax.numpy as jnp
from jax.experimental import pallas as pl
from jax.experimental.pallas import tpu as pltpu


def _make_rezero_kernel(native_mul: bool):
    def kernel(alpha_ref, x_ref, o_ref):
        a = alpha_ref[0]                      # f32 scalar from SMEM
        if native_mul:
            # sub-32-bit floats: multiply in the native dtype (vreg-pressure
            # headroom; avoids the f32 round-trip pack/unpack per tile).
            o_ref[...] = x_ref[...] * a.astype(o_ref.dtype)
        else:
            # f32 (and anything else): faithful f32 multiply, cast once on store.
            o_ref[...] = (a * x_ref[...].astype(jnp.float32)).astype(o_ref.dtype)
    return kernel


def _sublane_for(dtype) -> int:
    # Sub-32-bit dtypes pack along sublanes: 8 rows (4-byte), 16 (2-byte), 32 (1-byte).
    return {4: 8, 2: 16, 1: 32}.get(jnp.dtype(dtype).itemsize, 8)


def _choose_layout(n: int, sublane: int):
    """Pick (rows, lanes) for a lane-dense 2D view of an aligned flat array.

    n is divisible by sublane*128 (or small), so no padding is ever needed:
    lanes=128 always yields rows % sublane == 0.
    """
    for lanes in (2048, 1024, 512, 256, 128):
        if n % lanes:
            continue
        rows = n // lanes
        if rows % sublane == 0 or rows <= sublane:
            return rows, lanes
    return n // 128, 128  # unreachable for aligned n; safe fallback


def _block_budget():
    """(target_block_bytes, vmem_limit_bytes), generation-aware via VMEM size."""
    cap = None
    try:
        info = pltpu.get_tpu_info()
        for attr in ("vmem_capacity_bytes", "vmem_size_bytes", "vmem_bytes"):
            cap = getattr(info, attr, None)
            if cap:
                break
    except Exception:
        cap = None
    if not cap:
        # Unknown chip: 4 MiB blocks / 32 MiB scoped limit is safe on every gen
        # (2 bufs x (in+out) x 4 MiB = 16 MiB live).
        return 4 * 1024 * 1024, 32 * 1024 * 1024
    cap = int(cap)
    if cap <= 64 * 1024 * 1024:
        # v7x: 64 MiB VMEM per TC but ~3.2 TB/s HBM -> bigger blocks amortize
        # the ~0.35us per-step overhead; 2 x (in+out) x 8 MiB = 32 MiB < 48 MiB.
        return 8 * 1024 * 1024, 48 * 1024 * 1024
    # v5e / v6e: 128 MiB physical VMEM, plenty of headroom.
    return 8 * 1024 * 1024, 64 * 1024 * 1024


def _rezero_2d(x2d, alpha32, target_block_bytes, vmem_limit_bytes, native_mul):
    rows, lanes = x2d.shape
    itemsize = jnp.dtype(x2d.dtype).itemsize
    sublane = _sublane_for(x2d.dtype)

    if rows % sublane != 0:
        tile_r = rows  # tiny array: single full-extent block (block == full dims)
    else:
        tile_r = max(sublane,
                     (target_block_bytes // (lanes * itemsize)) // sublane * sublane)
        tile_r = min(rows, tile_r)
        # Guarantee >= 2 grid steps when possible so v7x's two TensorCores
        # both get work (dimension_semantics="parallel" shards the grid).
        if pl.cdiv(rows, tile_r) == 1 and rows >= 2 * sublane:
            half = (rows // 2 + sublane - 1) // sublane * sublane
            tile_r = max(sublane, min(half, rows - sublane))
    grid = (pl.cdiv(rows, tile_r),)

    return pl.pallas_call(
        _make_rezero_kernel(native_mul),
        out_shape=jax.ShapeDtypeStruct((rows, lanes), x2d.dtype),
        grid_spec=pltpu.PrefetchScalarGridSpec(
            num_scalar_prefetch=0,
            grid=grid,
            in_specs=[
                pl.BlockSpec(memory_space=pltpu.SMEM),            # alpha (f32 scalar)
                pl.BlockSpec((tile_r, lanes), lambda i: (i, 0)),  # x tile
            ],
            out_specs=pl.BlockSpec((tile_r, lanes), lambda i: (i, 0)),
        ),
        compiler_params=pltpu.CompilerParams(
            dimension_semantics=("parallel",),
            vmem_limit_bytes=vmem_limit_bytes,
        ),
        cost_estimate=pl.CostEstimate(
            flops=rows * lanes, transcendentals=0,
            bytes_accessed=2 * rows * lanes * itemsize),
    )(alpha32, x2d)


def rezero(x: jax.Array, alpha: jax.Array) -> jax.Array:
    """alpha * x, elementwise, computed in a tiled Pallas TPU kernel.

    x: any shape (here NCHW). alpha: shape (1,) scalar parameter (f32).
    """
    orig_shape = x.shape
    dtype = x.dtype
    n = x.size
    if n == 0:
        return x
    itemsize = jnp.dtype(dtype).itemsize
    sublane = _sublane_for(dtype)

    alpha32 = alpha.astype(jnp.float32).reshape(-1)
    # TODO(synk): output dtype follows x (PyTorch would promote bf16*f32->f32).
    native_mul = jnp.issubdtype(dtype, jnp.floating) and itemsize < 4

    target_block_bytes, vmem_limit_bytes = _block_budget()

    def xla_scale(v):
        return (alpha32[0] * v.astype(jnp.float32)).astype(dtype)

    flat = x.reshape(-1)
    align = sublane * 128                  # one full (sublane, 128) tile
    main_n = n - (n % align)

    if main_n == 0:
        # Entire array smaller than one tile: plain XLA multiply.
        return xla_scale(flat).reshape(orig_shape)

    rows, lanes = _choose_layout(main_n, sublane)

    if main_n == n:
        # Aligned (common NCHW) case: reshape is free, no pad, no slice.
        out2d = _rezero_2d(flat.reshape(rows, lanes), alpha32,
                           target_block_bytes, vmem_limit_bytes, native_mul)
        return out2d.reshape(orig_shape)

    # Ragged case: aligned prefix through the kernel, tiny tail (< align elems)
    # through plain XLA.  One concat copy to stitch, which is still ~2 fewer
    # full HBM passes than the previous pad + slice approach.
    out_main = _rezero_2d(flat[:main_n].reshape(rows, lanes), alpha32,
                          target_block_bytes, vmem_limit_bytes, native_mul)
    out_tail = xla_scale(flat[main_n:])
    return jnp.concatenate([out_main.reshape(-1), out_tail]).reshape(orig_shape)


if __name__ == "__main__":
    key = jax.random.PRNGKey(0)
    # NCHW input, like the PyTorch module would see.
    x = jax.random.normal(key, (2, 4, 16, 16), dtype=jnp.float32)

    # Parameter init: torch.zeros(size=(1,)) — deterministic zero init.
    alpha = jnp.zeros((1,), dtype=jnp.float32)

    out = jax.block_until_ready(rezero(x, alpha))
    assert out.shape == x.shape and out.dtype == x.dtype
    assert jnp.allclose(out, jnp.zeros_like(x))

    # Non-zero alpha (as after training drifts away from 0).
    alpha2 = jnp.array([0.37], dtype=jnp.float32)
    out2 = jax.block_until_ready(rezero(x, alpha2))
    assert jnp.allclose(out2, 0.37 * x, atol=1e-6)

    # Ragged size exercises the prefix-kernel + XLA-tail path (no pad/slice).
    x3 = jax.random.normal(jax.random.PRNGKey(1), (3, 5, 7, 11), dtype=jnp.float32)
    out3 = jax.block_until_ready(rezero(x3, alpha2))
    assert out3.shape == x3.shape
    assert jnp.allclose(out3, 0.37 * x3, atol=1e-6)

    # bf16 exercises the native-dtype multiply path.
    xb = x.astype(jnp.bfloat16)
    out4 = jax.block_until_ready(rezero(xb, alpha2))
    assert out4.dtype == jnp.bfloat16 and out4.shape == xb.shape
    assert jnp.allclose(out4.astype(jnp.float32),
                        0.37 * xb.astype(jnp.float32), atol=1e-2, rtol=1e-2)

    print("KERNEL_OK")
</pallas_src>

<mosaic_0001>
module attributes {stable_mosaic.version = 11 : i64} {
  func.func @kernel(%arg0: i32, %arg1: memref<1xf32, #tpu.memory_space<smem>>, %arg2: memref<1x2048xf32, #tpu.memory_space<vmem>>, %arg3: memref<1x2048xf32, #tpu.memory_space<vmem>>) attributes {dimension_semantics = [#tpu.dimension_semantics<parallel>], iteration_bounds = array<i64: 1>, scalar_prefetch = 0 : i64, scratch_operands = 0 : i64, tpu.core_type = #tpu.core_type<tc>, window_params = [{transform_indices = @transform_0, window_bounds = array<i64: 1>}, {transform_indices = @transform_1, window_bounds = array<i64: 1, 2048>}, {transform_indices = @transform_2, window_bounds = array<i64: 1, 2048>}]} {
    %c0 = arith.constant 0 : index
    %0 = memref.load %arg1[%c0] : memref<1xf32, #tpu.memory_space<smem>>
    %c0_0 = arith.constant 0 : index
    %c0_1 = arith.constant 0 : index
    %1 = vector.load %arg2[%c0_0, %c0_1] : memref<1x2048xf32, #tpu.memory_space<vmem>>, vector<1x2048xf32>
    %2 = vector.broadcast %0 : f32 to vector<1x2048xf32>
    %3 = arith.mulf %2, %1 : vector<1x2048xf32>
    %c0_2 = arith.constant 0 : index
    %c0_3 = arith.constant 0 : index
    %4 = vector.load %arg3[%c0_2, %c0_3] : memref<1x2048xf32, #tpu.memory_space<vmem>>, vector<1x2048xf32>
    tpu.vector_store %arg3[%c0_2, %c0_3], %3 {strides = array<i32>} : memref<1x2048xf32, #tpu.memory_space<vmem>>, vector<1x2048xf32>,
    return
  }
  func.func @transform_0(%arg0: i32) -> i32 {
    %c0_i32 = arith.constant 0 : i32
    %c0_i32_0 = arith.constant 0 : i32
    return %c0_i32 : i32
  }
  func.func @transform_1(%arg0: i32) -> (i32, i32) {
    %c0_i32 = arith.constant 0 : i32
    %c0_i32_0 = arith.constant 0 : i32
    return %arg0, %c0_i32 : i32, i32
  }
  func.func @transform_2(%arg0: i32) -> (i32, i32) {
    %c0_i32 = arith.constant 0 : i32
    %c0_i32_0 = arith.constant 0 : i32
    return %arg0, %c0_i32 : i32, i32
  }
}

</mosaic_0001>

<llo_original>
// kernel: tpu_custom_call.1
$region0: #{tpu_custom_call.1}
  #allocation0 [shape = 'u32[]', space=smem, size = 0x4, offset = 0x4, fixed_abs, tag = 'smem constant byte address 0x4 - core index']
  #allocation1 [shape = 'u32[144,128]{1,0:T(1,128)}', space=vmem, size = 0x12000, scoped, tag = 'internal scratch']
  #allocation2 [shape = 'f32[1]{0:T(128)S(6)}', space=smem, size = 0x200, scoped, tag = 'scoped memory for tpu_custom_call.1']
  %s0 = inlined_call_operand.<no memory space> [shape: f32[1], index: 0, kind: input, shape index: {}]
  %s1 = inlined_call_operand.hbm [shape: f32[1,2048], index: 1, kind: input, shape index: {}]
  %s2 = inlined_call_operand.hbm [shape: f32[1,2048], index: 2, kind: output, shape index: {}]
  %s3 = sld [smem:[#allocation0]]
  $region22: #{tpu_custom_call.1} parent=0
    _
  %s5 = ssub.s32 1, %s3
  %s6 = scalar_select 0, %s5, %s3
  %7 = sst [smem:[#allocation2]] %s0
  $region1: #{tpu_custom_call.1} parent=0
    #allocation3 [shape = 'u8[8192]{0}', space=vmem, size = 0x2000, scoped, tag = 'input window, operand 1, single buffered']
    #allocation4 [shape = 's32[1]{0}', space=sflag, size = 0x4, scoped, tag = 'scoped memory for tpu_custom_call.1']
    #allocation5 [shape = 's32[1]{0}', space=sflag, size = 0x4, scoped, tag = 'scoped memory for tpu_custom_call.1']
    #allocation6 [shape = 'u8[8192]{0}', space=vmem, size = 0x2000, scoped, tag = 'output window, operand 0, single buffered']
    %8 = vsyncpa [#allocation4], 0
    %9 = vsyncpa [#allocation5], 0
    // Predicated region
    $region2: #{tpu_custom_call.1} parent=1 // pred_check
      _
    $region3: #{tpu_custom_call.1} parent=1 // pred_check_branch
      %11 = sbr.rel (0) target = $region5
    $region4: #{tpu_custom_call.1} parent=1 // pred_region
      _
    $region5: #{tpu_custom_call.1} parent=1 // pred_fallthru
      _
    // Predicated region
    $region6: #{tpu_custom_call.1} parent=1 // pred_check
      _
    $region7: #{tpu_custom_call.1} parent=1 // pred_check_branch
      %13 = sbr.rel (0) target = $region9
    $region8: #{tpu_custom_call.1} parent=1 // pred_region
      %s15 = ssub.s32 256, 256
      %16 = vsyncadd [#allocation4], %s15
      %s18 = sshll.u32 [#allocation3], 4
      %s19 = int_to_ptr.vmem [resolvable:$true] %s18
      %21 = dma.hbm_to_vmem [thread:$0]  %s1, 256, %s19, [#allocation4]
    $region9: #{tpu_custom_call.1} parent=1 // pred_fallthru
      _
    // Predicated region
    $region10: #{tpu_custom_call.1} parent=1 // pred_check
      _
    $region11: #{tpu_custom_call.1} parent=1 // pred_check_branch
      %23 = sbr.rel (0) target = $region13
    $region12: #{tpu_custom_call.1} parent=1 // pred_region
      %24 = dma.done [#allocation4], 256
    $region13: #{tpu_custom_call.1} parent=1 // pred_fallthru
      _
    %s25 = sld [smem:[#allocation2]]
    %v26 = vld [vmem:[#allocation3] sm:$0xff]
    %v27 = vld [vmem:[#allocation3 + $0x8] sm:$0xff]
    %v28 = vstv %s25
    %v29 = vmul.f32 %v28, %v26
    %v30 = vmul.f32 %v28, %v27
    %31 = vst [vmem:[#allocation6] sm:$0xff] %v29
    %32 = vst [vmem:[#allocation6 + $0x8] sm:$0xff] %v30
    // Predicated region
    $region14: #{tpu_custom_call.1} parent=1 // pred_check
      _
    $region15: #{tpu_custom_call.1} parent=1 // pred_check_branch
      %34 = sbr.rel (0) target = $region17
    $region16: #{tpu_custom_call.1} parent=1 // pred_region
      %s36 = ssub.s32 256, 256
      %37 = vsyncadd [#allocation5], %s36
      %s39 = sshll.u32 [#allocation6], 4
      %s40 = int_to_ptr.vmem [resolvable:$true] %s39
      %42 = dma.vmem_to_hbm [thread:$0]  %s40, 256, %s2, [#allocation5]
    $region17: #{tpu_custom_call.1} parent=1 // pred_fallthru
      _
    // Predicated region
    $region18: #{tpu_custom_call.1} parent=1 // pred_check
      _
    $region19: #{tpu_custom_call.1} parent=1 // pred_check_branch
      %44 = sbr.rel (0) target = $region21
    $region20: #{tpu_custom_call.1} parent=1 // pred_region
      %45 = dma.done [#allocation5], 256
    $region21: #{tpu_custom_call.1} parent=1 // pred_fallthru
      _
    %46 = vsyncpa [#allocation4], 1
    %47 = vsyncpa [#allocation5], 1

</llo_original>
